<compile_context>
chip_gen: v7x
topology: tpu7x:2x2x1
jax: 0.10.0
libtpu: 0.0.40
codegen_flags: <defaults>
</compile_context>

<pallas_src>
import functools

import jax
import jax.numpy as jnp
import numpy as np
from jax.experimental import pallas as pl
from jax.experimental.pallas import tpu as pltpu

_SIGMA = 0.2
_EPS = 1e-10


def _round_up(x, m):
    return ((x + m - 1) // m) * m


def _vmem_limit_bytes():
    """Generation-aware scoped-VMEM limit.

    v5e/v6e have 128 MiB VMEM -> raise the scoped limit to 64 MiB so bigger
    tiles reach the HBM-roofline plateau; v7x has 64 MiB per TC -> stay at the
    32 MiB scoped default so input + temporaries never overshoot.
    """
    cap = 64 * 1024 * 1024
    try:
        info = pltpu.get_tpu_info()
        cap = int(getattr(info, "vmem_capacity_bytes", cap) or cap)
    except Exception:
        pass
    return 64 * 1024 * 1024 if cap >= 100 * 1024 * 1024 else 32 * 1024 * 1024


def _pick_row_tile(n, c, itemsize, vmem_limit):
    """Rows per logits tile for kernel 1.

    Per row we budget the double-buffered input block (2*c*itemsize) plus ~4
    full-tile f32 temporaries (f32 cast, z, exp(z), compare/select) so that
    input + temporaries stay inside ~75% of the scoped VMEM limit.
    """
    sub = 8 if itemsize >= 4 else 16          # bf16 inputs want 16-row granularity
    per_row = 2 * c * itemsize + 4 * 4 * c
    budget = int(vmem_limit * 0.75)
    rows = budget // max(per_row, 1)
    rows = max(sub, min(2048, (rows // sub) * sub))
    rows = min(rows, _round_up(n, sub))
    return rows


def _pick_pair_tile(n, vmem_limit):
    """Rows per pairwise tile for kernel 2: ~6 f32 (TP, N) temporaries must fit."""
    budget = int(vmem_limit * 0.4)
    rows = budget // max(1, 6 * 4 * n)
    rows = max(8, min(1024, (rows // 8) * 8))
    rows = min(rows, _round_up(n, 8))
    return rows


def _per_sample_kernel(x_ref, t_ref, out_ref):
    """One pass over a (TM, C) logits tile -> packed [max-prob, correct, NLL]."""
    x = x_ref[...].astype(jnp.float32)                        # [TM, C]
    t = t_ref[...]                                            # [TM, 1] int32
    tm, c = x.shape

    row_max = jnp.max(x, axis=1, keepdims=True)               # [TM, 1]
    z = x - row_max
    sum_exp = jnp.sum(jnp.exp(z), axis=1, keepdims=True)      # single full-tile exp
    lse = jnp.log(sum_exp)                                    # [TM, 1]

    col = jax.lax.broadcasted_iota(jnp.int32, (tm, c), 1)     # [TM, C]
    z_t = jnp.sum(jnp.where(col == t, z, 0.0), axis=1, keepdims=True)   # z[target]

    # nll of (logpt + 1e-10): -(z_t - lse + 1e-10)
    nll = lse - z_t - jnp.float32(_EPS)
    # max predicted probability of exp(logpt + 1e-10): exp(1e-10 - lse)
    pmax = jnp.exp(jnp.float32(_EPS) - lse)
    # first arg-max class (torch tie-break), kept fully in int32 (no float cast)
    pred = jnp.min(jnp.where(x == row_max, col, jnp.int32(c)), axis=1, keepdims=True)
    corr = (pred == t).astype(jnp.float32)

    # Single packed output stream (one output DMA instead of three lane-1 ones).
    out_ref[:, 0:1] = pmax
    out_ref[:, 1:2] = corr
    out_ref[:, 2:3] = nll


def _pair_sums_kernel(col_ref, row_ref, out_ref, *, n_valid, tile_rows):
    """Partial [S_cc, S_ii, S_ci] for one (TP, N) slab of the pairwise matrix."""
    i = pl.program_id(0)

    col = col_ref[...]                                        # [TP, 3]: pmax, corr, nll
    p_j = row_ref[0:1, :]                                     # [1, N]
    c_j = row_ref[1:2, :]                                     # [1, N]

    # Mask padded rows of a partial last tile *before* any arithmetic so that
    # garbage / NaN block padding cannot leak through 0 * NaN.
    row_ids = tile_rows * i + jax.lax.broadcasted_iota(jnp.int32, (col.shape[0], 1), 0)
    valid = row_ids < n_valid
    p_i = jnp.where(valid, col[:, 0:1], 0.0)                  # [TP, 1]
    c_i = jnp.where(valid, col[:, 1:2], 0.0)

    u_i = c_i * (1.0 - p_i)          # correct-side weight   (0 on padded rows)
    v_i = (1.0 - c_i) * p_i          # incorrect-side weight (0 on padded rows)
    u_j = c_j * (1.0 - p_j)          # [1, N]
    v_j = (1.0 - c_j) * p_j          # [1, N]

    # Laplacian kernel over all pairs in this slab (EUP exp; VPU sub/abs/mul).
    kmat = jnp.exp(jnp.abs(p_i - p_j) * jnp.float32(-1.0 / (2.0 * _SIGMA)))  # [TP, N]

    # Offload the O(TP*N) contractions to the MXU:  R = kmat @ [u_j; v_j]^T.
    w = jnp.concatenate([u_j, v_j], axis=0)                   # [2, N]
    r = jax.lax.dot_general(
        kmat, w, (((1,), (1,)), ((), ())),
        preferred_element_type=jnp.float32,
        precision=jax.lax.Precision.HIGHEST)                  # [TP, 2]

    # s_cc = <u_i, R[:,0]>, s_ii = <v_i, R[:,1]>, s_ci = <u_i, R[:,1]>
    a3 = jnp.concatenate([u_i, v_i, u_i], axis=1)                        # [TP, 3]
    b3 = jnp.concatenate([r[:, 0:1], r[:, 1:2], r[:, 1:2]], axis=1)      # [TP, 3]
    sums3 = jnp.sum(a3 * b3, axis=0, keepdims=True)                      # [1, 3]

    # Per-tile partial sums into this step's own output block (no serial
    # accumulator -> grid axis can be "parallel"; summed outside).
    out_ref[...] = jnp.zeros_like(out_ref)
    out_ref[0, 0:1, 0:3] = sums3


def mmce_loss(logits: jax.Array, target: jax.Array, beta: float = 1.0) -> jax.Array:
    """logits: [N, C] float (f32 or bf16); target: [N] int. Returns scalar f32."""
    n, c = logits.shape
    target_2d = target.astype(jnp.int32).reshape(n, 1)
    vmem_limit = _vmem_limit_bytes()

    # ---- Kernel 1: one streaming pass over the logits (HBM-bound part) ----
    tm = _pick_row_tile(n, c, jnp.dtype(logits.dtype).itemsize, vmem_limit)
    stats = pl.pallas_call(
        _per_sample_kernel,
        out_shape=jax.ShapeDtypeStruct((n, 3), jnp.float32),   # [pmax, correct, nll]
        grid_spec=pltpu.PrefetchScalarGridSpec(
            num_scalar_prefetch=0,
            grid=(pl.cdiv(n, tm),),
            in_specs=[
                pl.BlockSpec((tm, c), lambda i: (i, 0)),
                pl.BlockSpec((tm, 1), lambda i: (i, 0)),
            ],
            out_specs=pl.BlockSpec((tm, 3), lambda i: (i, 0)),
        ),
        compiler_params=pltpu.CompilerParams(
            dimension_semantics=("parallel",),                 # both TCs on v7x
            vmem_limit_bytes=vmem_limit,
        ),
    )(logits, target_2d)

    # ---- Kernel 2: pairwise Laplacian-kernel MMD partial sums over N x N ----
    tp = _pick_pair_tile(n, vmem_limit)
    g = pl.cdiv(n, tp)
    stats_t = jnp.transpose(stats)                             # (3, n) resident rows
    pair_kernel = functools.partial(_pair_sums_kernel, n_valid=n, tile_rows=tp)
    partials = pl.pallas_call(
        pair_kernel,
        out_shape=jax.ShapeDtypeStruct((g, 8, 128), jnp.float32),
        grid_spec=pltpu.PrefetchScalarGridSpec(
            num_scalar_prefetch=0,
            grid=(g,),
            in_specs=[
                pl.BlockSpec((tp, 3), lambda i: (i, 0)),       # i-side column tile
                pl.BlockSpec((3, n), lambda i: (0, 0)),        # j-side rows (resident)
            ],
            out_specs=pl.BlockSpec((1, 8, 128), lambda i: (i, 0, 0)),
        ),
        compiler_params=pltpu.CompilerParams(
            dimension_semantics=("parallel",),                 # disjoint partials
            vmem_limit_bytes=vmem_limit,
        ),
    )(stats, stats_t)

    sums = jnp.sum(partials[:, 0, 0:3], axis=0)                # tree-sum of partials
    s_cc, s_ii, s_ci = sums[0], sums[1], sums[2]

    corr = stats[:, 1]
    nll = stats[:, 2]

    # ---- Scalar finalization (mirrors the torch cond_k / topk bookkeeping) ----
    nf = jnp.float32(n)
    m = jnp.sum(corr)                 # number of correct predictions (float)
    nn = nf - m                       # number of incorrect predictions
    cond = (m > 0).astype(jnp.float32)

    k_eff = jnp.where(m > 0, jnp.maximum(m, 1.0), 2.0)
    kp_eff = jnp.where(m > 0, jnp.maximum(nn, 1.0), nf - 2.0)

    cc_mean = s_cc / (k_eff * k_eff)
    ii_mean = s_ii / (kp_eff * kp_eff)
    ci_mean = s_ci / (k_eff * kp_eff)

    mmd = (cc_mean / (m * m + 1e-5)
           + ii_mean / (nn * nn + 1e-5)
           - 2.0 * ci_mean / (m * nn + 1e-5))
    mmce = jnp.maximum(cond * jnp.sqrt(mmd + 1e-10), 0.0)

    ce = jnp.mean(nll)
    return ce + jnp.float32(beta) * mmce


# ----------------------------- reference (NumPy) -----------------------------
def _reference_loss_np(logits, target, beta=1.0):
    """Literal float64 translation of the PyTorch MMCELoss.forward."""
    x = np.asarray(logits, np.float64)
    t = np.asarray(target)
    n = x.shape[0]

    z = x - x.max(axis=1, keepdims=True)
    logpt = z - np.log(np.exp(z).sum(axis=1, keepdims=True))
    lp = logpt + 1e-10
    probs = np.exp(lp)
    pmax = probs.max(axis=1)
    pred = probs.argmax(axis=1)
    correct = (pred == t).astype(np.float64)
    nll = -lp[np.arange(n), t].mean()

    k = correct.sum()
    k_p = (1.0 - correct).sum()
    cond_k = 0 if k == 0 else 1
    cond_k_p = 0 if k == 0 else 1
    k_eff = int(max(k, 1) * cond_k * cond_k_p + (1 - cond_k * cond_k_p) * 2)
    kp_eff = int(max(k_p, 1) * cond_k_p * cond_k + (1 - cond_k_p * cond_k) * (n - 2))

    cp = np.sort(pmax * correct)[::-1][:k_eff]
    ip = np.sort(pmax * (1.0 - correct))[::-1][:kp_eff]

    def kern(a, b):
        return np.exp(-np.abs(a[:, None] - b[None, :]) / (2 * _SIGMA))

    cc = (kern(cp, cp) * np.outer(1.0 - cp, 1.0 - cp)).mean()
    ii = (kern(ip, ip) * np.outer(ip, ip)).mean()
    ci = (kern(cp, ip) * np.outer(1.0 - cp, ip)).mean()

    m = correct.sum()
    nn = (1.0 - correct).sum()
    mmd = cc / (m * m + 1e-5) + ii / (nn * nn + 1e-5) - 2.0 * ci / (m * nn + 1e-5)
    mmce = max(float(cond_k * cond_k_p) * np.sqrt(mmd + 1e-10), 0.0)
    return float(nll + beta * mmce)


def _run_case(key, n, c):
    k1, k2 = jax.random.split(key)
    logits = jax.random.normal(k1, (n, c), dtype=jnp.float32)
    # Make the first half of the batch correct and the second half wrong so the
    # MMCE branch is actually exercised.
    pred = jnp.argmax(logits, axis=1).astype(jnp.int32)
    offs = 1 + jax.random.randint(k2, (n,), 0, c - 1, dtype=jnp.int32)
    wrong = (pred + offs) % c
    target = jnp.where(jnp.arange(n) < n // 2, pred, wrong).astype(jnp.int32)

    loss = mmce_loss(logits, target, beta=1.0)
    loss = jax.block_until_ready(loss)

    ref = _reference_loss_np(np.asarray(logits), np.asarray(target), beta=1.0)
    assert np.allclose(np.asarray(loss), ref, atol=2e-3, rtol=1e-3), \
        (n, c, float(loss), ref)


if __name__ == "__main__":
    key = jax.random.PRNGKey(0)
    ka, kb = jax.random.split(key)
    _run_case(ka, 8, 32)     # exact tiles
    _run_case(kb, 12, 40)    # partial (masked) batch / pair tiles
    print("KERNEL_OK")
</pallas_src>

<mosaic_0001>
module attributes {stable_mosaic.version = 11 : i64} {
  func.func @_per_sample_kernel(%arg0: i32, %arg1: memref<8x32xf32, #tpu.memory_space<vmem>>, %arg2: memref<8x1xi32, #tpu.memory_space<vmem>>, %arg3: memref<8x3xf32, #tpu.memory_space<vmem>>) attributes {dimension_semantics = [#tpu.dimension_semantics<parallel>], iteration_bounds = array<i64: 1>, scalar_prefetch = 0 : i64, scratch_operands = 0 : i64, tpu.core_type = #tpu.core_type<tc>, window_params = [{transform_indices = @transform_0, window_bounds = array<i64: 8, 32>}, {transform_indices = @transform_1, window_bounds = array<i64: 8, 1>}, {transform_indices = @transform_2, window_bounds = array<i64: 8, 3>}]} {
    %c0 = arith.constant 0 : index
    %c0_0 = arith.constant 0 : index
    %0 = vector.load %arg1[%c0, %c0_0] : memref<8x32xf32, #tpu.memory_space<vmem>>, vector<8x32xf32>
    %c0_1 = arith.constant 0 : index
    %c0_2 = arith.constant 0 : index
    %1 = vector.load %arg2[%c0_1, %c0_2] : memref<8x1xi32, #tpu.memory_space<vmem>>, vector<8x1xi32>
    %cst = arith.constant dense<0xFF800000> : vector<8xf32>
    %2 = vector.multi_reduction <maximumf>, %0, %cst [1] : vector<8x32xf32> to vector<8xf32>
    %3 = vector.shape_cast %2 : vector<8xf32> to vector<8x1xf32>
    %4 = vector.broadcast %3 : vector<8x1xf32> to vector<8x32xf32>
    %5 = arith.subf %0, %4 : vector<8x32xf32>
    %6 = math.exp %5 : vector<8x32xf32>
    %cst_3 = arith.constant dense<0.000000e+00> : vector<8xf32>
    %7 = vector.multi_reduction <add>, %6, %cst_3 [1] : vector<8x32xf32> to vector<8xf32>
    %8 = vector.shape_cast %7 : vector<8xf32> to vector<8x1xf32>
    %9 = math.log %8 : vector<8x1xf32>
    %10 = tpu.iota {dimensions = array<i32: 1>} : vector<8x32xi32>
    %11 = vector.broadcast %1 : vector<8x1xi32> to vector<8x32xi32>
    %12 = arith.cmpi eq, %10, %11 : vector<8x32xi32>
    %cst_4 = arith.constant 0.000000e+00 : f32
    %13 = vector.broadcast %cst_4 : f32 to vector<8x32xf32>
    %14 = arith.select %12, %5, %13 : vector<8x32xi1>, vector<8x32xf32>
    %cst_5 = arith.constant dense<0.000000e+00> : vector<8xf32>
    %15 = vector.multi_reduction <add>, %14, %cst_5 [1] : vector<8x32xf32> to vector<8xf32>
    %16 = vector.shape_cast %15 : vector<8xf32> to vector<8x1xf32>
    %17 = arith.subf %9, %16 : vector<8x1xf32>
    %cst_6 = arith.constant 1.000000e-10 : f32
    %18 = vector.broadcast %cst_6 : f32 to vector<8x1xf32>
    %19 = arith.subf %17, %18 : vector<8x1xf32>
    %cst_7 = arith.constant 1.000000e-10 : f32
    %20 = vector.broadcast %cst_7 : f32 to vector<8x1xf32>
    %21 = arith.subf %20, %9 : vector<8x1xf32>
    %22 = math.exp %21 : vector<8x1xf32>
    %23 = vector.broadcast %3 : vector<8x1xf32> to vector<8x32xf32>
    %24 = arith.cmpf oeq, %0, %23 : vector<8x32xf32>
    %c32_i32 = arith.constant 32 : i32
    %25 = vector.broadcast %c32_i32 : i32 to vector<8x32xi32>
    %26 = arith.select %24, %10, %25 : vector<8x32xi1>, vector<8x32xi32>
    %cst_8 = arith.constant dense<2147483647> : vector<8xi32>
    %27 = vector.multi_reduction <minsi>, %26, %cst_8 [1] : vector<8x32xi32> to vector<8xi32>
    %28 = vector.shape_cast %27 : vector<8xi32> to vector<8x1xi32>
    %29 = arith.cmpi eq, %28, %1 : vector<8x1xi32>
    %30 = arith.extui %29 : vector<8x1xi1> to vector<8x1xi32>
    %31 = arith.sitofp %30 : vector<8x1xi32> to vector<8x1xf32>
    %c0_9 = arith.constant 0 : index
    %c0_10 = arith.constant 0 : index
    %32 = vector.load %arg3[%c0_9, %c0_10] : memref<8x3xf32, #tpu.memory_space<vmem>>, vector<8x1xf32>
    tpu.vector_store %arg3[%c0_9, %c0_10], %22 {strides = array<i32>} : memref<8x3xf32, #tpu.memory_space<vmem>>, vector<8x1xf32>,
    %c0_11 = arith.constant 0 : index
    %c1 = arith.constant 1 : index
    %33 = vector.load %arg3[%c0_11, %c1] : memref<8x3xf32, #tpu.memory_space<vmem>>, vector<8x1xf32>
    tpu.vector_store %arg3[%c0_11, %c1], %31 {strides = array<i32>} : memref<8x3xf32, #tpu.memory_space<vmem>>, vector<8x1xf32>,
    %c0_12 = arith.constant 0 : index
    %c2 = arith.constant 2 : index
    %34 = vector.load %arg3[%c0_12, %c2] : memref<8x3xf32, #tpu.memory_space<vmem>>, vector<8x1xf32>
    tpu.vector_store %arg3[%c0_12, %c2], %19 {strides = array<i32>} : memref<8x3xf32, #tpu.memory_space<vmem>>, vector<8x1xf32>,
    return
  }
  func.func @transform_0(%arg0: i32) -> (i32, i32) {
    %c0_i32 = arith.constant 0 : i32
    %c0_i32_0 = arith.constant 0 : i32
    return %arg0, %c0_i32 : i32, i32
  }
  func.func @transform_1(%arg0: i32) -> (i32, i32) {
    %c0_i32 = arith.constant 0 : i32
    %c0_i32_0 = arith.constant 0 : i32
    return %arg0, %c0_i32 : i32, i32
  }
  func.func @transform_2(%arg0: i32) -> (i32, i32) {
    %c0_i32 = arith.constant 0 : i32
    %c0_i32_0 = arith.constant 0 : i32
    return %arg0, %c0_i32 : i32, i32
  }
}

</mosaic_0001>

<llo_original>
// kernel: tpu_custom_call.1
$region0: #{tpu_custom_call.1}
  #allocation0 [shape = 'u32[]', space=smem, size = 0x4, offset = 0x4, fixed_abs, tag = 'smem constant byte address 0x4 - core index']
  #allocation1 [shape = 'u32[144,128]{1,0:T(1,128)}', space=vmem, size = 0x12000, scoped, tag = 'internal scratch']
  %s0 = inlined_call_operand.vmem [shape: f32[8,32], index: 0, kind: input, shape index: {}]
  %s1 = inlined_call_operand.vmem [shape: s32[8,1], index: 1, kind: input, shape index: {}]
  %s2 = inlined_call_operand.vmem [shape: f32[8,3], index: 2, kind: output, shape index: {}]
  %s3 = sld [smem:[#allocation0]]
  $region18: #{tpu_custom_call.1} parent=0
    _
  %s5 = ssub.s32 1, %s3
  %s6 = scalar_select 0, %s5, %s3
  // Predicated region
  $region2: #{tpu_custom_call.1} parent=0 // pred_check
    _
  $region3: #{tpu_custom_call.1} parent=0 // pred_check_branch
    %8 = sbr.rel (0) target = $region5
  $region4: #{tpu_custom_call.1} parent=0 // pred_region
    _
  $region5: #{tpu_custom_call.1} parent=0 // pred_fallthru
    _
  // Predicated region
  $region6: #{tpu_custom_call.1} parent=0 // pred_check
    _
  $region7: #{tpu_custom_call.1} parent=0 // pred_check_branch
    %10 = sbr.rel (0) target = $region9
  $region8: #{tpu_custom_call.1} parent=0 // pred_region
    _
  $region9: #{tpu_custom_call.1} parent=0 // pred_fallthru
    _
  %v11 = vld [vmem:[%s0] sm:$0xff]
  %v12 = vld [vmem:[%s1] sm:$0xff]
  %vm13 = vcmask 261120
  %v14 = vsel %vm13, %v11, -inf
  %15 = vmax.xlane.f32.xlu0 %v14
  %v16 = vpop.xlane.xlu0 %15
  %v17 = vsub.f32 %v11, %v16
  %v18 = vmul.f32 %v17, 1.442695
  %v19 = vpow.pop %v18
  %v20 = vsel %vm13, %v19, 0.0
  %21 = vadd.xlane.f32.xlu0 %v20
  %v22 = vpop.xlane.xlu0 %21
  %v23 = vlog2.pop %v22
  %v24 = vmul.f32 %v23, 0.6931472
  %v25 = vlaneseq
  %v26 = vand.u32 %v25, 127
  %27 = vset.pattern.permute.xlu0 0
  %28 = vperm.xlu0 %27, %v12
  %v29 = vpop.permute.xlu0 %28
  %vm30 = vcmp.eq.s32.totalorder %v26, %v29
  %v31 = vsel %vm30, %v17, 0.0
  %v32 = vsel %vm13, %v31, 0.0
  %33 = vadd.xlane.f32.xlu0 %v32
  %v34 = vpop.xlane.xlu0 %33
  %v35 = vsub.f32 %v24, %v34
  %v36 = vsub.f32 %v35, 1e-10
  %v37 = vsub.f32 1e-10, %v24
  %v38 = vmul.f32 %v37, 1.442695
  %v39 = vpow.pop %v38
  %vm40 = vcmp.eq.f32.partialorder %v11, %v16
  %v41 = vsel %vm40, %v26, 32
  %v42 = vsel %vm13, %v41, 2147483647
  %v43 = vand.u32 %v42, 65535
  %v44 = vshra.s32 %v42, 16
  %v45 = vcvt.s32.f32 %v43
  %v46 = vcvt.s32.f32 %v44
  %47 = vmin.xlane.f32.xlu0 %v46
  %v48 = vpop.xlane.xlu0 %47
  %vm49 = vcmp.eq.f32.partialorder %v46, %v48
  %v50 = vsel %vm49, %v45, inf
  %51 = vmin.xlane.f32.xlu0 %v50
  %v52 = vpop.xlane.xlu0 %51
  %v53 = vcvt.f32.s32 %v52
  %v54 = vcvt.f32.s32 %v48
  %v55 = vshll.u32 %v54, 16
  %v56 = vadd.s32 %v55, %v53
  %vm57 = vcmp.eq.s32.totalorder %v56, %v12
  %v58 = vsel %vm57, 1, 0
  %v59 = vcvt.s32.f32 %v58
  %vm60 = vcmask 7168
  %61 = vst.msk [vmem:[%s2] sm:$0xff] %vm60, %v39
  %63 = vrot.lane.b32.xlu0 %v59, 1
  %v64 = vpop.permute.xlu0 %63
  %vm66 = vcmask 15368
  %67 = vst.msk [vmem:[%s2] sm:$0xff] %vm66, %v64
  %vm68 = vcmask 23568
  %69 = vst.msk [vmem:[%s2] sm:$0xff] %vm68, %v36
  // Predicated region
  $region10: #{tpu_custom_call.1} parent=0 // pred_check
    _
  $region11: #{tpu_custom_call.1} parent=0 // pred_check_branch
    %71 = sbr.rel (0) target = $region13
  $region12: #{tpu_custom_call.1} parent=0 // pred_region
    _
  $region13: #{tpu_custom_call.1} parent=0 // pred_fallthru
    _
  // Predicated region
  $region14: #{tpu_custom_call.1} parent=0 // pred_check
    _
  $region15: #{tpu_custom_call.1} parent=0 // pred_check_branch
    %73 = sbr.rel (0) target = $region17
  $region16: #{tpu_custom_call.1} parent=0 // pred_region
    _
  $region17: #{tpu_custom_call.1} parent=0 // pred_fallthru
    _

</llo_original>
